<compile_context>
chip_gen: v7x
topology: tpu7x:2x2x1
jax: 0.10.0
libtpu: 0.0.40
codegen_flags: <defaults>
</compile_context>

<pallas_src>
import jax
import jax.numpy as jnp
from jax.experimental import pallas as pl
from jax.experimental.pallas import tpu as pltpu


def dummy_encoder_kernel(x_ref, w_ref, o_ref):
    """Single fused matmul: out = x_pad @ W_full (bias folded into W_full)."""
    o_ref[...] = jnp.dot(x_ref[...], w_ref[...],
                         preferred_element_type=jnp.float32)


def _round_up(n, m):
    return ((n + m - 1) // m) * m


def dummy_encoder(x, w_mu, b_mu, w_var, b_var):
    """x: (B, Cin); w_*: (Cin, Cout); b_*: (Cout,). Returns (mu, logvar)."""
    B, Cin = x.shape
    Cout = w_mu.shape[1]

    # Padded dims: K holds Cin + a ones-column (bias fold), rounded to 128
    # lanes; N makes the fused output store lane-dense; Bp keeps the sublane
    # axis a multiple of 8 for any batch size.
    K = _round_up(Cin + 1, 128)          # 120+1 -> 128
    N = _round_up(2 * Cout, 128)         # 4     -> 128
    Bp = _round_up(B, 8)                 # 8     -> 8

    # --- Fuse heads + biases into one (K, N) weight slab (f32). ---
    w_fused = jnp.concatenate([w_mu, w_var], axis=1)             # (Cin, 2*Cout)
    b_fused = jnp.concatenate([b_mu, b_var], axis=0)             # (2*Cout,)
    w_full = jnp.zeros((K, N), jnp.float32)
    w_full = w_full.at[:Cin, :2 * Cout].set(w_fused.astype(jnp.float32))
    w_full = w_full.at[K - 1, :2 * Cout].set(b_fused.astype(jnp.float32))

    # --- Pad x to (Bp, K); last column = 1.0 so the bias row contributes b. ---
    x_pad = jnp.zeros((Bp, K), jnp.float32)
    x_pad = x_pad.at[:B, :Cin].set(x.astype(jnp.float32))
    x_pad = x_pad.at[:, K - 1].set(1.0)

    # Whole-array blocks, single grid point (no serial grid loop needed).
    full = lambda shape: pl.BlockSpec(shape, lambda: (0,) * len(shape))

    out = pl.pallas_call(
        dummy_encoder_kernel,
        out_shape=jax.ShapeDtypeStruct((Bp, N), jnp.float32),
        grid_spec=pltpu.PrefetchScalarGridSpec(
            num_scalar_prefetch=0,
            grid=(),
            in_specs=[
                full((Bp, K)),
                full((K, N)),
            ],
            out_specs=full((Bp, N)),
        ),
        compiler_params=pltpu.CompilerParams(
            vmem_limit_bytes=32 * 1024 * 1024),
    )(x_pad, w_full)

    # Split the fused, padded output outside the kernel (free XLA slices).
    mu = out[:B, :Cout]
    logvar = out[:B, Cout:2 * Cout]
    return mu, logvar


def init_params(key, in_channels, out_channels):
    """Deterministic PyTorch-style (kaiming-uniform-ish) init for both heads."""
    k_mu_w, k_mu_b, k_var_w, k_var_b = jax.random.split(key, 4)
    bound = 1.0 / jnp.sqrt(in_channels)
    # Stored as (in, out) — transposed relative to torch's (out, in).
    w_mu = jax.random.uniform(k_mu_w, (in_channels, out_channels),
                              minval=-bound, maxval=bound, dtype=jnp.float32)
    b_mu = jax.random.uniform(k_mu_b, (out_channels,),
                              minval=-bound, maxval=bound, dtype=jnp.float32)
    w_var = jax.random.uniform(k_var_w, (in_channels, out_channels),
                               minval=-bound, maxval=bound, dtype=jnp.float32)
    b_var = jax.random.uniform(k_var_b, (out_channels,),
                               minval=-bound, maxval=bound, dtype=jnp.float32)
    return w_mu, b_mu, w_var, b_var


if __name__ == "__main__":
    key = jax.random.PRNGKey(0)
    k_x, k_p = jax.random.split(key)

    in_channels = 120   # matches DummyEncoder default
    out_channels = 2    # matches DummyEncoder default
    batch = 8

    x = jax.random.normal(k_x, (batch, in_channels), dtype=jnp.float32)
    w_mu, b_mu, w_var, b_var = init_params(k_p, in_channels, out_channels)

    mu, logvar = dummy_encoder(x, w_mu, b_mu, w_var, b_var)
    jax.block_until_ready((mu, logvar))

    # Reference check against plain JAX.
    mu_ref = x @ w_mu + b_mu
    var_ref = x @ w_var + b_var
    assert mu.shape == (batch, out_channels), "mu shape mismatch"
    assert logvar.shape == (batch, out_channels), "logvar shape mismatch"
    assert jnp.allclose(mu, mu_ref, atol=1e-4, rtol=1e-4), "mu mismatch"
    assert jnp.allclose(logvar, var_ref, atol=1e-4, rtol=1e-4), "logvar mismatch"

    print("KERNEL_OK")
</pallas_src>

<mosaic_0001>
module attributes {stable_mosaic.version = 11 : i64} {
  func.func @dummy_encoder_kernel(%arg0: memref<8x128xf32, #tpu.memory_space<vmem>>, %arg1: memref<128x128xf32, #tpu.memory_space<vmem>>, %arg2: memref<8x128xf32, #tpu.memory_space<vmem>>) attributes {dimension_semantics = [], scalar_prefetch = 0 : i64, scratch_operands = 0 : i64, tpu.core_type = #tpu.core_type<tc>} {
    %c0 = arith.constant 0 : index
    %c0_0 = arith.constant 0 : index
    %0 = vector.load %arg0[%c0, %c0_0] : memref<8x128xf32, #tpu.memory_space<vmem>>, vector<8x128xf32>
    %c0_1 = arith.constant 0 : index
    %c0_2 = arith.constant 0 : index
    %1 = vector.load %arg1[%c0_1, %c0_2] : memref<128x128xf32, #tpu.memory_space<vmem>>, vector<128x128xf32>
    %cst = arith.constant dense<0.000000e+00> : vector<8x128xf32>
    %2 = tpu.matmul %0, %1, %cst {dimension_numbers = #tpu.dot_dimension_numbers<[1], [0], [0], [1], [0, 0, 1, 1], [], []>} : vector<8x128xf32>, vector<128x128xf32>, vector<8x128xf32> -> vector<8x128xf32>
    %c0_3 = arith.constant 0 : index
    %c0_4 = arith.constant 0 : index
    %3 = vector.load %arg2[%c0_3, %c0_4] : memref<8x128xf32, #tpu.memory_space<vmem>>, vector<8x128xf32>
    tpu.vector_store %arg2[%c0_3, %c0_4], %2 {strides = array<i32>} : memref<8x128xf32, #tpu.memory_space<vmem>>, vector<8x128xf32>,
    return
  }
}

</mosaic_0001>

<llo_original>
// kernel: tpu_custom_call.1
$region0: #{tpu_custom_call.1}
  #allocation0 [shape = 'u32[]', space=smem, size = 0x4, offset = 0x4, fixed_abs, tag = 'smem constant byte address 0x4 - core index']
  #allocation1 [shape = 'u32[144,128]{1,0:T(1,128)}', space=vmem, size = 0x12000, scoped, tag = 'internal scratch']
  %s0 = inlined_call_operand.hbm [shape: f32[8,128], index: 0, kind: input, shape index: {}]
  %s1 = inlined_call_operand.hbm [shape: f32[128,128], index: 1, kind: input, shape index: {}]
  %s2 = inlined_call_operand.hbm [shape: f32[8,128], index: 2, kind: output, shape index: {}]
  %s3 = sld [smem:[#allocation0]]
  $region26: #{tpu_custom_call.1} parent=0
    _
  %s5 = ssub.s32 1, %s3
  %s6 = scalar_select 0, %s5, %s3
  $region1: #{tpu_custom_call.1} parent=0
    #allocation2 [shape = 'u8[4096]{0}', space=vmem, size = 0x1000, scoped, tag = 'input window, operand 0, single buffered']
    #allocation3 [shape = 's32[1]{0}', space=sflag, size = 0x4, scoped, tag = 'scoped memory for tpu_custom_call.1']
    #allocation4 [shape = 's32[1]{0}', space=sflag, size = 0x4, scoped, tag = 'scoped memory for tpu_custom_call.1']
    #allocation5 [shape = 'u8[65536]{0}', space=vmem, size = 0x10000, scoped, tag = 'input window, operand 1, single buffered']
    #allocation6 [shape = 's32[1]{0}', space=sflag, size = 0x4, scoped, tag = 'scoped memory for tpu_custom_call.1']
    #allocation7 [shape = 'u8[4096]{0}', space=vmem, size = 0x1000, scoped, tag = 'output window, operand 0, single buffered']
    %7 = vsyncpa [#allocation3], 0
    %8 = vsyncpa [#allocation6], 0
    %9 = vsyncpa [#allocation4], 0
    // Predicated region
    $region2: #{tpu_custom_call.1} parent=1 // pred_check
      _
    $region3: #{tpu_custom_call.1} parent=1 // pred_check_branch
      %11 = sbr.rel (0) target = $region5
    $region4: #{tpu_custom_call.1} parent=1 // pred_region
      %s13 = ssub.s32 128, 128
      %14 = vsyncadd [#allocation3], %s13
      %s16 = sshll.u32 [#allocation2], 4
      %s17 = int_to_ptr.vmem [resolvable:$true] %s16
      %19 = dma.hbm_to_vmem [thread:$0]  %s0, 128, %s17, [#allocation3]
    $region5: #{tpu_custom_call.1} parent=1 // pred_fallthru
      _
    // Predicated region
    $region6: #{tpu_custom_call.1} parent=1 // pred_check
      _
    $region7: #{tpu_custom_call.1} parent=1 // pred_check_branch
      %21 = sbr.rel (0) target = $region9
    $region8: #{tpu_custom_call.1} parent=1 // pred_region
      %s23 = ssub.s32 2048, 2048
      %24 = vsyncadd [#allocation6], %s23
      %s25 = sshll.u32 [#allocation5], 4
      %s26 = int_to_ptr.vmem [resolvable:$true] %s25
      %31 = dma.hbm_to_vmem [thread:$0]  %s1, 2048, %s26, [#allocation6], 128, 128, 8
    $region9: #{tpu_custom_call.1} parent=1 // pred_fallthru
      _
    // Predicated region
    $region10: #{tpu_custom_call.1} parent=1 // pred_check
      _
    $region11: #{tpu_custom_call.1} parent=1 // pred_check_branch
      %33 = sbr.rel (0) target = $region13
    $region12: #{tpu_custom_call.1} parent=1 // pred_region
      %34 = dma.done [#allocation3], 128
    $region13: #{tpu_custom_call.1} parent=1 // pred_fallthru
      _
    // Predicated region
    $region14: #{tpu_custom_call.1} parent=1 // pred_check
      _
    $region15: #{tpu_custom_call.1} parent=1 // pred_check_branch
      %36 = sbr.rel (0) target = $region17
    $region16: #{tpu_custom_call.1} parent=1 // pred_region
      %37 = dma.done [#allocation6], 2048
    $region17: #{tpu_custom_call.1} parent=1 // pred_fallthru
      _
    %v38 = vld [vmem:[#allocation2] sm:$0xff]
    %v39 = vld [vmem:[#allocation5] sm:$0xff]
    %v40 = vld [vmem:[#allocation5 + $0x8] sm:$0xff]
    %v41 = vld [vmem:[#allocation5 + $0x10] sm:$0xff]
    %v42 = vld [vmem:[#allocation5 + $0x18] sm:$0xff]
    %v43 = vld [vmem:[#allocation5 + $0x20] sm:$0xff]
    %v44 = vld [vmem:[#allocation5 + $0x28] sm:$0xff]
    %v45 = vld [vmem:[#allocation5 + $0x30] sm:$0xff]
    %v46 = vld [vmem:[#allocation5 + $0x38] sm:$0xff]
    %v47 = vld [vmem:[#allocation5 + $0x40] sm:$0xff]
    %v48 = vld [vmem:[#allocation5 + $0x48] sm:$0xff]
    %v49 = vld [vmem:[#allocation5 + $0x50] sm:$0xff]
    %v50 = vld [vmem:[#allocation5 + $0x58] sm:$0xff]
    %v51 = vld [vmem:[#allocation5 + $0x60] sm:$0xff]
    %v52 = vld [vmem:[#allocation5 + $0x68] sm:$0xff]
    %v53 = vld [vmem:[#allocation5 + $0x70] sm:$0xff]
    %v54 = vld [vmem:[#allocation5 + $0x78] sm:$0xff]
    %55 = vmatprep.subr.mxu0 0.0
    %56 = vmatpush1.msra.mxu0 %v39
    %57 = vmatprep.subr.mxu0 0.0
    %58 = vmatpush1.msra.mxu0 %v40
    %59 = vmatprep.subr.mxu0 0.0
    %60 = vmatpush1.msra.mxu0 %v41
    %61 = vmatprep.subr.mxu0 0.0
    %62 = vmatpush1.msra.mxu0 %v42
    %63 = vmatprep.subr.mxu0 0.0
    %64 = vmatpush1.msra.mxu0 %v43
    %65 = vmatprep.subr.mxu0 0.0
    %66 = vmatpush1.msra.mxu0 %v44
    %67 = vmatprep.subr.mxu0 0.0
    %68 = vmatpush1.msra.mxu0 %v45
    %69 = vmatprep.subr.mxu0 0.0
    %70 = vmatpush1.msra.mxu0 %v46
    %71 = vmatprep.subr.mxu0 0.0
    %72 = vmatpush1.msra.mxu0 %v47
    %73 = vmatprep.subr.mxu0 0.0
    %74 = vmatpush1.msra.mxu0 %v48
    %75 = vmatprep.subr.mxu0 0.0
    %76 = vmatpush1.msra.mxu0 %v49
    %77 = vmatprep.subr.mxu0 0.0
    %78 = vmatpush1.msra.mxu0 %v50
    %79 = vmatprep.subr.mxu0 0.0
    %80 = vmatpush1.msra.mxu0 %v51
    %81 = vmatprep.subr.mxu0 0.0
    %82 = vmatpush1.msra.mxu0 %v52
    %83 = vmatprep.subr.mxu0 0.0
    %84 = vmatpush1.msra.mxu0 %v53
    %85 = vmatprep.subr.mxu0 0.0
    %86 = vmatpush1.msra.mxu0 %v54
    %87 = vmatprep.subr.mxu0 0.0
    %88 = vmatpush1.msra.mxu0 0.0
    %89 = vmatprep.subr.mxu0 0.0
    %90 = vmatpush1.msra.mxu0 0.0
    %91 = vmatprep.subr.mxu0 0.0
    %92 = vmatpush1.msra.mxu0 0.0
    %93 = vmatprep.subr.mxu0 0.0
    %94 = vmatpush1.msra.mxu0 0.0
    %95 = vmatprep.subr.mxu0 0.0
    %96 = vmatpush1.msra.mxu0 0.0
    %97 = vmatprep.subr.mxu0 0.0
    %98 = vmatpush1.msra.mxu0 0.0
    %99 = vmatprep.subr.mxu0 0.0
    %100 = vmatpush1.msra.mxu0 0.0
    %101 = vmatprep.subr.mxu0 0.0
    %102 = vmatpush1.msra.mxu0 0.0
    %103 = vmatprep.subr.mxu0 0.0
    %104 = vmatpush1.msra.mxu0 0.0
    %105 = vmatprep.subr.mxu0 0.0
    %106 = vmatpush1.msra.mxu0 0.0
    %107 = vmatprep.subr.mxu0 0.0
    %108 = vmatpush1.msra.mxu0 0.0
    %109 = vmatprep.subr.mxu0 0.0
    %110 = vmatpush1.msra.mxu0 0.0
    %111 = vmatprep.subr.mxu0 0.0
    %112 = vmatpush1.msra.mxu0 0.0
    %113 = vmatprep.subr.mxu0 0.0
    %114 = vmatpush1.msra.mxu0 0.0
    %115 = vmatprep.subr.mxu0 0.0
    %116 = vmatpush1.msra.mxu0 0.0
    %117 = vmatprep.subr.mxu0 0.0
    %118 = vmatpush1.msra.mxu0 0.0
    %119 = vmatprep.mubr.f32.mxu0 0.0
    %120 = vmatmul.mubr.f32.gmra.mrb[0].mxu0 %v38
    %v121 = vpop.f32.mrb[0].mxu0
    %v122 = vadd.f32 0.0, %v121
    %v123 = vpop.f32.mrb[0].mxu0
    %124 = vdwg.mxu0
    %125 = vst [vmem:[#allocation7] sm:$0xff] %v122
    // Predicated region
    $region18: #{tpu_custom_call.1} parent=1 // pred_check
      _
    $region19: #{tpu_custom_call.1} parent=1 // pred_check_branch
      %127 = sbr.rel (0) target = $region21
    $region20: #{tpu_custom_call.1} parent=1 // pred_region
      %s129 = ssub.s32 128, 128
      %130 = vsyncadd [#allocation4], %s129
      %s132 = sshll.u32 [#allocation7], 4
      %s133 = int_to_ptr.vmem [resolvable:$true] %s132
      %135 = dma.vmem_to_hbm [thread:$0]  %s133, 128, %s2, [#allocation4]
    $region21: #{tpu_custom_call.1} parent=1 // pred_fallthru
      _
    // Predicated region
    $region22: #{tpu_custom_call.1} parent=1 // pred_check
      _
    $region23: #{tpu_custom_call.1} parent=1 // pred_check_branch
      %137 = sbr.rel (0) target = $region25
    $region24: #{tpu_custom_call.1} parent=1 // pred_region
      %138 = dma.done [#allocation4], 128
    $region25: #{tpu_custom_call.1} parent=1 // pred_fallthru
      _
    %139 = vsyncpa [#allocation3], 1
    %140 = vsyncpa [#allocation6], 1
    %141 = vsyncpa [#allocation4], 1

</llo_original>
